<compile_context>
chip_gen: v7x
topology: tpu7x:2x2x1
jax: 0.10.0
libtpu: 0.0.40
codegen_flags: <defaults>
</compile_context>

<pallas_src>
import functools
import math

import jax
import jax.numpy as jnp
from jax.experimental import pallas as pl
from jax.experimental.pallas import tpu as pltpu


# ---------------------------------------------------------------------------
# Small helpers
# ---------------------------------------------------------------------------
def _round_up(x, m):
    return (x + m - 1) // m * m


def _pick_tile(n, max_tile):
    """Largest tile in {8..2048} that divides n (n is a multiple of 8)."""
    for cand in (2048, 1024, 512, 256, 128, 64, 32, 16, 8):
        if cand <= max_tile and n % cand == 0:
            return cand
    return 8


def _std_normal_cdf(x):
    # TODO(synk): Gaussian CDF via tanh approximation (~1e-3 abs error vs the
    # erf-based compressai CDF).
    c = math.sqrt(2.0 / math.pi)
    return 0.5 * (1.0 + jnp.tanh(c * (x + 0.044715 * x * x * x)))


def _apply_act(r, act):
    if act == "relu":
        return jnp.maximum(r, 0.0)
    if act == "tanh":
        return jnp.tanh(r)
    return r


# ---------------------------------------------------------------------------
# Pallas kernel 1: tiled matmul + bias + activation (conv hot path)
#   grid = (M tiles ["parallel"], K tiles ["arbitrary"])
#   A (tm, tk) bf16;  B (Kp, ncp) bf16 resident (constant index_map);
#   bias (1, ncp) f32;  out (tm, ncp) bf16;  acc (tm, ncp) f32 scratch.
# ---------------------------------------------------------------------------
K_RESIDENT_MAX = 4096   # single resident K block below this


def _mm_kernel(a_ref, b_ref, bias_ref, o_ref, acc_ref, *, act, n_k, tk):
    k = pl.program_id(1)
    if n_k == 1:
        r = jnp.dot(a_ref[...], b_ref[...],
                    preferred_element_type=jnp.float32) + bias_ref[...]
        o_ref[...] = _apply_act(r, act).astype(o_ref.dtype)
    else:
        @pl.when(k == 0)
        def _():
            acc_ref[...] = jnp.zeros_like(acc_ref)

        start = pl.multiple_of(k * tk, tk)
        acc_ref[...] += jnp.dot(a_ref[...], b_ref[pl.ds(start, tk), :],
                                preferred_element_type=jnp.float32)

        @pl.when(k == n_k - 1)
        def _():
            r = acc_ref[...] + bias_ref[...]
            o_ref[...] = _apply_act(r, act).astype(o_ref.dtype)


def matmul_bias_act(a, pw, act=None, tm_max=1024):
    """a: (M, K) bf16 patches; pw: prepacked conv weights. Returns (M, cout) bf16."""
    M, K = a.shape
    Kp, tk, ncp, cout = pw["Kp"], pw["tk"], pw["ncp"], pw["cout"]
    n_k = Kp // tk
    if Kp != K:
        a = jnp.pad(a, ((0, 0), (0, Kp - K)))
    Mp = _round_up(M, 8)
    tm = _pick_tile(Mp, tm_max)
    if Mp != M:
        a = jnp.pad(a, ((0, Mp - M), (0, 0)))
    n_m = Mp // tm

    out = pl.pallas_call(
        functools.partial(_mm_kernel, act=act, n_k=n_k, tk=tk),
        out_shape=jax.ShapeDtypeStruct((Mp, ncp), jnp.bfloat16),
        grid=(n_m, n_k),
        in_specs=[pl.BlockSpec((tm, tk), lambda i, k: (i, k)),
                  pl.BlockSpec((Kp, ncp), lambda i, k: (0, 0)),   # resident weights
                  pl.BlockSpec((1, ncp), lambda i, k: (0, 0))],
        out_specs=pl.BlockSpec((tm, ncp), lambda i, k: (i, 0)),
        scratch_shapes=[pltpu.VMEM((tm, ncp), jnp.float32)],
        compiler_params=pltpu.CompilerParams(
            dimension_semantics=("parallel", "arbitrary")),
    )(a.astype(jnp.bfloat16), pw["wm"], pw["b"])

    if Mp != M or ncp != cout:
        out = out[:M, :cout]
    return out


# ---------------------------------------------------------------------------
# Pallas kernel 2: conv matmul with fused ConvLSTM gate epilogue
#   extra input: c tile (tm, ch) f32; outputs: h (tm, ch) bf16, c_new (tm, ch) f32
# ---------------------------------------------------------------------------
def _lstm_epilogue(g, c_ref, h_ref, cnew_ref, ch, act):
    i_g = jax.nn.sigmoid(g[:, 0 * ch:1 * ch])
    f_g = jax.nn.sigmoid(g[:, 1 * ch:2 * ch])
    o_g = jax.nn.sigmoid(g[:, 2 * ch:3 * ch])
    g_g = jnp.tanh(g[:, 3 * ch:4 * ch])
    c_new = f_g * c_ref[...] + i_g * g_g
    if act == "relu":
        h = o_g * jnp.maximum(c_new, 0.0)
    else:
        h = o_g * jnp.tanh(c_new)
    cnew_ref[...] = c_new
    h_ref[...] = h.astype(h_ref.dtype)


def _mm_lstm_kernel(a_ref, b_ref, bias_ref, c_ref, h_ref, cnew_ref, acc_ref,
                    *, n_k, tk, ch, act):
    k = pl.program_id(1)
    if n_k == 1:
        g = jnp.dot(a_ref[...], b_ref[...],
                    preferred_element_type=jnp.float32) + bias_ref[...]
        _lstm_epilogue(g, c_ref, h_ref, cnew_ref, ch, act)
    else:
        @pl.when(k == 0)
        def _():
            acc_ref[...] = jnp.zeros_like(acc_ref)

        start = pl.multiple_of(k * tk, tk)
        acc_ref[...] += jnp.dot(a_ref[...], b_ref[pl.ds(start, tk), :],
                                preferred_element_type=jnp.float32)

        @pl.when(k == n_k - 1)
        def _():
            g = acc_ref[...] + bias_ref[...]
            _lstm_epilogue(g, c_ref, h_ref, cnew_ref, ch, act)


def convlstm_matmul(patches, c2d, pw, act, tm_max=1024):
    M, K = patches.shape
    ch = c2d.shape[1]
    Kp, tk, ncp = pw["Kp"], pw["tk"], pw["ncp"]
    n_k = Kp // tk
    if Kp != K:
        patches = jnp.pad(patches, ((0, 0), (0, Kp - K)))
    Mp = _round_up(M, 8)
    tm = _pick_tile(Mp, tm_max)
    if Mp != M:
        patches = jnp.pad(patches, ((0, Mp - M), (0, 0)))
        c2d = jnp.pad(c2d, ((0, Mp - M), (0, 0)))
    n_m = Mp // tm

    h, c_new = pl.pallas_call(
        functools.partial(_mm_lstm_kernel, n_k=n_k, tk=tk, ch=ch, act=act),
        out_shape=(jax.ShapeDtypeStruct((Mp, ch), jnp.bfloat16),
                   jax.ShapeDtypeStruct((Mp, ch), jnp.float32)),
        grid=(n_m, n_k),
        in_specs=[pl.BlockSpec((tm, tk), lambda i, k: (i, k)),
                  pl.BlockSpec((Kp, ncp), lambda i, k: (0, 0)),   # resident weights
                  pl.BlockSpec((1, ncp), lambda i, k: (0, 0)),
                  pl.BlockSpec((tm, ch), lambda i, k: (i, 0))],
        out_specs=(pl.BlockSpec((tm, ch), lambda i, k: (i, 0)),
                   pl.BlockSpec((tm, ch), lambda i, k: (i, 0))),
        scratch_shapes=[pltpu.VMEM((tm, ncp), jnp.float32)],
        compiler_params=pltpu.CompilerParams(
            dimension_semantics=("parallel", "arbitrary")),
    )(patches.astype(jnp.bfloat16), pw["wm"], pw["b"], c2d.astype(jnp.float32))

    if Mp != M:
        h, c_new = h[:M], c_new[:M]
    return h, c_new


# ---------------------------------------------------------------------------
# im2col (bf16) + conv wrappers (NHWC)
# ---------------------------------------------------------------------------
def im2col(x, k, stride):
    """x: (N, H, W, Cin) bf16 -> (N*Ho*Wo, kh*kw*Cin) bf16 patches."""
    # TODO(synk): direct shifted-window DMA (tap grid axis) would avoid
    # materializing the im2col matrix in HBM; kept as XLA glue for now.
    N_, H_, W_, Cin = x.shape
    kh, kw = k
    pad = kh // 2
    xp = jnp.pad(x, ((0, 0), (pad, pad), (pad, pad), (0, 0)))
    Ho = (H_ + 2 * pad - kh) // stride + 1
    Wo = (W_ + 2 * pad - kw) // stride + 1
    cols = []
    for i in range(kh):
        for j in range(kw):
            cols.append(xp[:, i:i + stride * Ho:stride,
                           j:j + stride * Wo:stride, :])
    patches = jnp.concatenate(cols, axis=-1).reshape(N_ * Ho * Wo, kh * kw * Cin)
    return patches, Ho, Wo


def conv2d(x, pw, stride, act=None):
    patches, Ho, Wo = im2col(x, pw["k"], stride)
    out2d = matmul_bias_act(patches, pw, act=act)
    return out2d.reshape(x.shape[0], Ho, Wo, pw["cout"])


def conv_lstm(x, state, pw, act):
    """x: (N,H,W,ch) bf16; state = (h, c). Fused gates in the matmul epilogue."""
    h_prev, c_prev = state
    inp = jnp.concatenate([x, h_prev.astype(x.dtype)], axis=-1)
    N_, H_, W_, _ = inp.shape
    patches, Ho, Wo = im2col(inp, pw["k"], 1)
    ch = c_prev.shape[-1]
    h2, c2 = convlstm_matmul(patches, c_prev.reshape(-1, ch).astype(jnp.float32),
                             pw, act)
    h_new = h2.reshape(N_, Ho, Wo, ch)
    c_new = c2.reshape(N_, Ho, Wo, ch)
    return h_new, (h_new, c_new)


# ---------------------------------------------------------------------------
# Pallas kernel 3: factorized BitEstimator + fused bit-count reduction
# ---------------------------------------------------------------------------
def _bitest_kernel(z_ref, sh1, b1, ta1, sh2, b2, ta2, sh3, b3, ta3, sh4, b4,
                   bits_ref, acc_ref, *, rows, tr, mask):
    i = pl.program_id(0)

    @pl.when(i == 0)
    def _():
        acc_ref[...] = jnp.zeros_like(acc_ref)

    z = z_ref[...].astype(jnp.float32)

    def chain(x):
        x = x * sh1[...] + b1[...]
        x = x + jnp.tanh(x) * ta1[...]
        x = x * sh2[...] + b2[...]
        x = x + jnp.tanh(x) * ta2[...]
        x = x * sh3[...] + b3[...]
        x = x + jnp.tanh(x) * ta3[...]
        x = x * sh4[...] + b4[...]
        return jax.nn.sigmoid(x)

    prob = chain(z + 0.5) - chain(z - 0.5)
    bits = jnp.clip(-jnp.log(prob + 1e-10) * (1.0 / math.log(2.0)), 0.0, 50.0)
    if mask:
        row = jax.lax.broadcasted_iota(jnp.int32, bits.shape, 0) + i * tr
        bits = jnp.where(row < rows, bits, 0.0)
    acc_ref[...] += jnp.sum(bits, axis=0, keepdims=True)     # lane-dense (1, C)

    @pl.when(i == pl.num_programs(0) - 1)
    def _():
        bits_ref[...] = jnp.sum(acc_ref[...])[None, None]


def iclr18_estimate_bits(z, bp):
    """z: NHWC latent (bf16); returns total bits (scalar f32)."""
    Nn, Hh, Ww, C = z.shape
    rows = Nn * Hh * Ww
    z2 = z.reshape(rows, C)
    rows_p = _round_up(rows, 8)
    tr = _pick_tile(rows_p, 1024)
    if rows_p != rows:
        z2 = jnp.pad(z2, ((0, rows_p - rows), (0, 0)))
    n_r = rows_p // tr
    row_spec = pl.BlockSpec((tr, C), lambda i: (i, 0))
    par_spec = pl.BlockSpec((1, C), lambda i: (0, 0))
    ins = [z2,
           bp["sh"][0], bp["b"][0], bp["ta"][0],
           bp["sh"][1], bp["b"][1], bp["ta"][1],
           bp["sh"][2], bp["b"][2], bp["ta"][2],
           bp["sh"][3], bp["b"][3]]
    bits = pl.pallas_call(
        functools.partial(_bitest_kernel, rows=rows, tr=tr,
                          mask=(rows_p != rows)),
        out_shape=jax.ShapeDtypeStruct((1, 1), jnp.float32),
        grid=(n_r,),
        in_specs=[row_spec] + [par_spec] * 11,
        out_specs=pl.BlockSpec((1, 1), lambda i: (0, 0)),
        scratch_shapes=[pltpu.VMEM((1, C), jnp.float32)],
        compiler_params=pltpu.CompilerParams(
            dimension_semantics=("arbitrary",)),
    )(*ins)
    return bits[0, 0]


# ---------------------------------------------------------------------------
# Pallas kernel 4: GaussianConditional fused -log2(likelihood) reduction
# (quantization noise / rounding done in XLA; no in-kernel PRNG)
# ---------------------------------------------------------------------------
def _gauss_loglik(y_hat, mu, scale):
    values = jnp.abs(y_hat - mu)
    upper = _std_normal_cdf((0.5 - values) / scale)
    lower = _std_normal_cdf((-0.5 - values) / scale)
    return jnp.log(jnp.maximum(upper - lower, 1e-9))   # likelihood lower bound


def _gauss_bits_kernel(yh_ref, s_ref, m_ref, bits_ref, acc_ref,
                       *, rows, tr, mask):
    i = pl.program_id(0)

    @pl.when(i == 0)
    def _():
        acc_ref[...] = jnp.zeros_like(acc_ref)

    y_hat = yh_ref[...].astype(jnp.float32)
    mu = m_ref[...].astype(jnp.float32)
    scale = jnp.maximum(s_ref[...].astype(jnp.float32), 0.11)   # scale bound
    logl = _gauss_loglik(y_hat, mu, scale)
    if mask:
        row = jax.lax.broadcasted_iota(jnp.int32, logl.shape, 0) + i * tr
        logl = jnp.where(row < rows, logl, 0.0)
    acc_ref[...] += jnp.sum(logl, axis=0, keepdims=True)        # lane-dense (1, C)

    @pl.when(i == pl.num_programs(0) - 1)
    def _():
        bits_ref[...] = (jnp.sum(acc_ref[...]) *
                         (-1.0 / math.log(2.0)))[None, None]


def gaussian_conditional(y, scale, mu, train, key):
    """y/scale/mu: NHWC bf16. Returns (y_hat NHWC bf16, total bits scalar)."""
    Nn, Hh, Ww, C = y.shape
    rows = Nn * Hh * Ww

    if train:
        noise = jax.random.uniform(key, y.shape, jnp.float32,
                                   minval=-0.5, maxval=0.5)
        y_hat = (y.astype(jnp.float32) + noise).astype(jnp.bfloat16)
    else:
        y_hat = (jnp.round(y.astype(jnp.float32) - mu.astype(jnp.float32))
                 + mu.astype(jnp.float32)).astype(jnp.bfloat16)

    rows_p = _round_up(rows, 8)
    tr = _pick_tile(rows_p, 1024)
    n_r = rows_p // tr

    def prep(a):
        a2 = a.reshape(rows, C)
        if rows_p != rows:
            a2 = jnp.pad(a2, ((0, rows_p - rows), (0, 0)))
        return a2

    row_spec = pl.BlockSpec((tr, C), lambda i: (i, 0))
    bits = pl.pallas_call(
        functools.partial(_gauss_bits_kernel, rows=rows, tr=tr,
                          mask=(rows_p != rows)),
        out_shape=jax.ShapeDtypeStruct((1, 1), jnp.float32),
        grid=(n_r,),
        in_specs=[row_spec, row_spec, row_spec],
        out_specs=pl.BlockSpec((1, 1), lambda i: (0, 0)),
        scratch_shapes=[pltpu.VMEM((1, C), jnp.float32)],
        compiler_params=pltpu.CompilerParams(
            dimension_semantics=("arbitrary",)),
    )(prep(y_hat), prep(scale), prep(mu))
    return y_hat, bits[0, 0]


# ---------------------------------------------------------------------------
# Plain-JAX glue: upsample, bilinear warp (NHWC)
# ---------------------------------------------------------------------------
def upsample2(x):
    # TODO(synk): phase-decomposed (subpixel) conv would avoid the 4x HBM blow-up.
    return jnp.repeat(jnp.repeat(x, 2, axis=1), 2, axis=2)


def flow_warp(im, flow):
    # TODO(synk): data-dependent bilinear gather kept in plain JAX.
    im = im.astype(jnp.float32)
    flow = flow.astype(jnp.float32)
    N_, H_, W_, C_ = im.shape
    gy, gx = jnp.meshgrid(jnp.arange(H_, dtype=jnp.float32),
                          jnp.arange(W_, dtype=jnp.float32), indexing="ij")
    xs = gx[None] + flow[..., 0]
    ys = gy[None] + flow[..., 1]
    x0 = jnp.floor(xs)
    y0 = jnp.floor(ys)
    wx = (xs - x0)[..., None]
    wy = (ys - y0)[..., None]
    flat = im.reshape(N_, H_ * W_, C_)

    def gather(yy, xx):
        yy = jnp.clip(yy, 0, H_ - 1).astype(jnp.int32)
        xx = jnp.clip(xx, 0, W_ - 1).astype(jnp.int32)
        idx = (yy * W_ + xx).reshape(N_, H_ * W_, 1)
        idx = jnp.broadcast_to(idx, (N_, H_ * W_, C_))
        return jnp.take_along_axis(flat, idx, axis=1).reshape(N_, H_, W_, C_)

    v00 = gather(y0, x0)
    v01 = gather(y0, x0 + 1)
    v10 = gather(y0 + 1, x0)
    v11 = gather(y0 + 1, x0 + 1)
    out = (v00 * (1 - wx) * (1 - wy) + v01 * wx * (1 - wy)
           + v10 * (1 - wx) * wy + v11 * wx * wy)
    return out.astype(jnp.bfloat16)


# ---------------------------------------------------------------------------
# Sub-networks (structures approximated; weights synthetic & deterministic)
# ---------------------------------------------------------------------------
def me_spynet(im1, im2, params):
    # TODO(synk): single-level approximation of the ME_Spynet coarse-to-fine pyramid.
    flow0 = jnp.zeros(im1.shape[:3] + (2,), jnp.bfloat16)
    inp = jnp.concatenate([im1, flow_warp(im2, flow0), flow0], axis=-1)  # 8 ch
    x = conv2d(inp, params[0], 1, act="relu")
    x = conv2d(x, params[1], 1, act="relu")
    return flow0 + conv2d(x, params[2], 1, act=None)


def warp_net(x, params):
    x = conv2d(x, params[0], 1, act="relu")
    x = conv2d(x, params[1], 1, act="relu")
    return conv2d(x, params[2], 1, act=None)


def rae_encoder(x, state, p, act="relu"):
    f = conv2d(x, p["c1"], 2, act="relu")
    h, new_state = conv_lstm(f, state, p["lstm"], act)
    y = conv2d(h, p["c2"], 2, act=None)
    return {"y": y, "rae_state_encoder": new_state}


def rae_decoder(y, state, p, act="relu"):
    f = conv2d(upsample2(y), p["c1"], 1, act="relu")
    h, new_state = conv_lstm(f, state, p["lstm"], act)
    x_hat = conv2d(upsample2(h), p["c2"], 1, act=None)
    return {"x_hat": x_hat, "rae_state_decoder": new_state}


def rpm(lat_prev, state, p):
    f = conv2d(lat_prev, p["c1"], 1, act="relu")
    h, new_state = conv_lstm(f, state, p["lstm"], "tanh")
    out = conv2d(h, p["c2"], 1, act=None)
    mu, scale = jnp.split(out, 2, axis=-1)
    return {"mu": mu, "scale": scale, "h_state": new_state}


# ---------------------------------------------------------------------------
# Parameter init + prepacking (deterministic, synthetic)
# ---------------------------------------------------------------------------
def _choose_tk(K):
    if K <= K_RESIDENT_MAX:
        return K, K                       # single resident K block, no pad
    for tk in (1024, 512, 256, 128):      # lane-aligned divisor -> no K pad
        if K % tk == 0:
            return tk, K
    tk = 512
    return tk, _round_up(K, tk)


def prepack_conv(w, b):
    """w: (Cout, Cin, kh, kw) f32 -> bf16 lane-padded (Kp, ncp) matmul weights."""
    cout, cin, kh, kw = w.shape
    K = kh * kw * cin
    wm = jnp.transpose(w, (2, 3, 1, 0)).reshape(K, cout)
    ncp = _round_up(cout, 128)
    wm = jnp.pad(wm, ((0, 0), (0, ncp - cout)))
    tk, Kp = _choose_tk(K)
    if Kp != K:
        wm = jnp.pad(wm, ((0, Kp - K), (0, 0)))
    return {"wm": wm.astype(jnp.bfloat16),
            "b": jnp.pad(b, (0, ncp - cout)).reshape(1, ncp).astype(jnp.float32),
            "cout": cout, "k": (kh, kw), "K": K, "Kp": Kp, "tk": tk, "ncp": ncp}


def conv_params(key, cin, cout, k):
    k1, k2 = jax.random.split(key)
    fan_in = cin * k * k
    w = jax.random.normal(k1, (cout, cin, k, k), jnp.float32) / math.sqrt(fan_in)
    b = jax.random.normal(k2, (cout,), jnp.float32) * 0.01
    return prepack_conv(w, b)


def init_params(key, N=16, M=32):
    keys = iter(jax.random.split(key, 64))
    p = {}
    p["me"] = [conv_params(next(keys), 8, N, 3),
               conv_params(next(keys), N, N, 3),
               conv_params(next(keys), N, 2, 3)]
    p["warp"] = [conv_params(next(keys), 6, N, 3),
                 conv_params(next(keys), N, N, 3),
                 conv_params(next(keys), N, 3, 3)]

    def rae(cin, cout, k):
        return {"c1": conv_params(next(keys), cin, N, k),
                "lstm": conv_params(next(keys), 2 * N, 4 * N, k),
                "c2": conv_params(next(keys), N, cout, k)}

    p["flow_enc"] = rae(2, M, 3)
    p["flow_dec"] = rae(M, 2, 3)
    p["res_enc"] = rae(3, M, 5)
    p["res_dec"] = rae(M, 3, 5)

    def rpm_p():
        return {"c1": conv_params(next(keys), M, N, 3),
                "lstm": conv_params(next(keys), 2 * N, 4 * N, 3),
                "c2": conv_params(next(keys), N, 2 * M, 3)}

    p["rpm_flow"] = rpm_p()
    p["rpm_res"] = rpm_p()

    def bitest(kk):
        ks2 = jax.random.split(kk, 11)

        def v(i):
            return jax.random.normal(ks2[i], (1, M), jnp.float32) * 0.1

        # softplus(h) / tanh(a) precomputed once (stable softplus via logaddexp).
        return {"sh": [jnp.logaddexp(0.0, v(i)) for i in range(4)],
                "b": [v(4 + i) for i in range(4)],
                "ta": [jnp.tanh(v(8 + i)) for i in range(3)]}

    p["ff_flow"] = bitest(next(keys))
    p["ff_res"] = bitest(next(keys))
    return p


# ---------------------------------------------------------------------------
# Full forward pass (mirrors Model.forward).  External image/latent tensors
# are NCHW f32 (PyTorch convention); internally NHWC bf16.
# ---------------------------------------------------------------------------
def model_forward(params, x_previous, x_current, flow_lat_prev, res_lat_prev,
                  rae_state_flow_encoder, rae_state_flow_decoder,
                  rae_state_residual_encoder, rae_state_residual_decoder,
                  rpm_state_flow, rpm_state_residual, frame_num, train,
                  noise_seed=0):
    def to_nhwc(t):
        return jnp.transpose(t, (0, 2, 3, 1)).astype(jnp.bfloat16)

    def to_nchw(t):
        return jnp.transpose(t, (0, 3, 1, 2)).astype(jnp.float32)

    base_key = jax.random.PRNGKey(noise_seed)

    x_prev = to_nhwc(x_previous)
    x_cur = to_nhwc(x_current)
    flow_lat_prev = to_nhwc(flow_lat_prev)
    res_lat_prev = to_nhwc(res_lat_prev)

    Nb, Hh, Ww, _ = x_cur.shape
    num_pixels = Nb * Hh * Ww

    mv_p2c = me_spynet(x_cur, x_prev, params["me"])

    flow_enc = rae_encoder(mv_p2c, rae_state_flow_encoder, params["flow_enc"])
    flow_encoded = flow_enc["y"]
    next_state_flow_encoder = flow_enc["rae_state_encoder"]

    flow_p = rpm(flow_lat_prev, rpm_state_flow, params["rpm_flow"])
    flow_mu, flow_scale = flow_p["mu"], flow_p["scale"]
    next_rpm_state_flow = flow_p["h_state"]

    if frame_num == 1:
        if train:
            noise = jax.random.uniform(jax.random.fold_in(base_key, 11),
                                       flow_encoded.shape, jnp.float32,
                                       minval=-0.5, maxval=0.5)
            flow_encoded_hat = (flow_encoded.astype(jnp.float32)
                                + noise).astype(jnp.bfloat16)
        else:
            flow_encoded_hat = jnp.round(flow_encoded)
        size_flow = iclr18_estimate_bits(flow_encoded_hat, params["ff_flow"])
        rate_flow = size_flow / num_pixels
    else:
        flow_encoded_hat, size_flow = gaussian_conditional(
            flow_encoded, flow_scale, flow_mu, train,
            jax.random.fold_in(base_key, 1))
        rate_flow = size_flow / num_pixels

    flow_dec = rae_decoder(flow_encoded_hat, rae_state_flow_decoder, params["flow_dec"])
    flow_hat = flow_dec["x_hat"]
    next_state_flow_decoder = flow_dec["rae_state_decoder"]

    # motion compensation
    warpframe = flow_warp(x_prev, flow_hat)
    prediction = warp_net(jnp.concatenate([warpframe, x_prev], axis=-1),
                          params["warp"]) + warpframe

    residual = x_cur - prediction
    res_enc = rae_encoder(residual, rae_state_residual_encoder, params["res_enc"])
    res_encoded = res_enc["y"]
    next_state_res_encoder = res_enc["rae_state_encoder"]

    res_p = rpm(res_lat_prev, rpm_state_residual, params["rpm_res"])
    residual_mu, residual_scale = res_p["mu"], res_p["scale"]
    next_rpm_state_res = res_p["h_state"]

    if frame_num == 1:
        if train:
            noise = jax.random.uniform(jax.random.fold_in(base_key, 12),
                                       res_encoded.shape, jnp.float32,
                                       minval=-0.5, maxval=0.5)
            res_encoded_hat = (res_encoded.astype(jnp.float32)
                               + noise).astype(jnp.bfloat16)
        else:
            res_encoded_hat = jnp.round(res_encoded)
        size_residual = iclr18_estimate_bits(res_encoded_hat, params["ff_res"])
        rate_residual = size_residual / num_pixels
    else:
        res_encoded_hat, size_residual = gaussian_conditional(
            res_encoded, residual_scale, residual_mu, train,
            jax.random.fold_in(base_key, 2))
        rate_residual = size_residual / num_pixels

    res_dec = rae_decoder(res_encoded_hat, rae_state_residual_decoder, params["res_dec"])
    residual_hat = res_dec["x_hat"]
    next_state_res_decoder = res_dec["rae_state_decoder"]

    x_current_hat = residual_hat + prediction

    outs = (to_nchw(x_current_hat), to_nchw(flow_encoded_hat), to_nchw(res_encoded_hat),
            next_state_flow_encoder, next_state_flow_decoder,
            next_state_res_encoder, next_state_res_decoder,
            next_rpm_state_flow, next_rpm_state_res,
            (rate_flow + rate_residual) / 2.0)
    if train:
        return outs
    return outs + (size_flow + size_residual,)


# ---------------------------------------------------------------------------
if __name__ == "__main__":
    N_hidden, M_lat = 16, 32          # small stand-ins for N=128, M=128
    B, C, H, W = 2, 3, 16, 16         # small stand-in for batch=4, 256x256

    params = init_params(jax.random.PRNGKey(0), N=N_hidden, M=M_lat)

    ks = jax.random.split(jax.random.PRNGKey(0), 8)
    x_prev = jax.random.uniform(ks[0], (B, C, H, W), jnp.float32)
    x_cur = jax.random.uniform(ks[1], (B, C, H, W), jnp.float32)
    flow_lat_prev = jax.random.normal(ks[2], (B, M_lat, H // 4, W // 4), jnp.float32)
    res_lat_prev = jax.random.normal(ks[3], (B, M_lat, H // 4, W // 4), jnp.float32)

    def zstate(hh):
        # recurrent states are NHWC internally
        z = jnp.zeros((B, hh, hh, N_hidden), jnp.float32)
        return (z, z)

    # I-frame path (factorized BitEstimator), eval mode.
    out1 = model_forward(
        params, x_prev, x_cur, flow_lat_prev, res_lat_prev,
        zstate(H // 2), zstate(H // 2), zstate(H // 2), zstate(H // 2),
        zstate(H // 4), zstate(H // 4),
        frame_num=1, train=False, noise_seed=0)
    jax.block_until_ready(out1)

    # P-frame path (Gaussian conditional, XLA-generated quant noise), train mode.
    out2 = model_forward(
        params, x_prev, x_cur, flow_lat_prev, res_lat_prev,
        zstate(H // 2), zstate(H // 2), zstate(H // 2), zstate(H // 2),
        zstate(H // 4), zstate(H // 4),
        frame_num=2, train=True, noise_seed=1)
    jax.block_until_ready(out2)

    print("KERNEL_OK")
</pallas_src>

<mosaic_0001>
module attributes {stable_mosaic.version = 11 : i64} {
  func.func @_mm_kernel(%arg0: i32, %arg1: i32, %arg2: memref<512x72xbf16, #tpu.memory_space<vmem>>, %arg3: memref<72x128xbf16, #tpu.memory_space<vmem>>, %arg4: memref<1x128xf32, #tpu.memory_space<vmem>>, %arg5: memref<512x128xbf16, #tpu.memory_space<vmem>>, %arg6: memref<512x128xf32, #tpu.memory_space<vmem>>) attributes {dimension_semantics = [#tpu.dimension_semantics<parallel>, #tpu.dimension_semantics<arbitrary>], iteration_bounds = array<i64: 1, 1>, scalar_prefetch = 0 : i64, scratch_operands = 1 : i64, tpu.core_type = #tpu.core_type<tc>, window_params = [{transform_indices = @transform_0, window_bounds = array<i64: 512, 72>}, {pipeline_mode = #tpu.pipeline_mode<synchronous>, transform_indices = @transform_1, window_bounds = array<i64: 72, 128>}, {pipeline_mode = #tpu.pipeline_mode<synchronous>, transform_indices = @transform_2, window_bounds = array<i64: 1, 128>}, {transform_indices = @transform_3, window_bounds = array<i64: 512, 128>}]} {
    %c0 = arith.constant 0 : index
    %c0_0 = arith.constant 0 : index
    %0 = vector.load %arg2[%c0, %c0_0] : memref<512x72xbf16, #tpu.memory_space<vmem>>, vector<512x72xbf16>
    %c0_1 = arith.constant 0 : index
    %c0_2 = arith.constant 0 : index
    %1 = vector.load %arg3[%c0_1, %c0_2] : memref<72x128xbf16, #tpu.memory_space<vmem>>, vector<72x128xbf16>
    %cst = arith.constant dense<0.000000e+00> : vector<512x128xf32>
    %2 = tpu.matmul %0, %1, %cst {dimension_numbers = #tpu.dot_dimension_numbers<[1], [0], [0], [1], [0, 0, 1, 1], [], []>} : vector<512x72xbf16>, vector<72x128xbf16>, vector<512x128xf32> -> vector<512x128xf32>
    %c0_3 = arith.constant 0 : index
    %c0_4 = arith.constant 0 : index
    %3 = vector.load %arg4[%c0_3, %c0_4] : memref<1x128xf32, #tpu.memory_space<vmem>>, vector<1x128xf32>
    %4 = vector.broadcast %3 : vector<1x128xf32> to vector<512x128xf32>
    %5 = arith.addf %2, %4 : vector<512x128xf32>
    %cst_5 = arith.constant 0.000000e+00 : f32
    %6 = vector.broadcast %cst_5 : f32 to vector<512x128xf32>
    %7 = arith.maximumf %5, %6 : vector<512x128xf32>
    %8 = arith.truncf %7 : vector<512x128xf32> to vector<512x128xbf16>
    %c0_6 = arith.constant 0 : index
    %c0_7 = arith.constant 0 : index
    %9 = vector.load %arg5[%c0_6, %c0_7] : memref<512x128xbf16, #tpu.memory_space<vmem>>, vector<512x128xbf16>
    tpu.vector_store %arg5[%c0_6, %c0_7], %8 {strides = array<i32>} : memref<512x128xbf16, #tpu.memory_space<vmem>>, vector<512x128xbf16>,
    return
  }
  func.func @transform_0(%arg0: i32, %arg1: i32) -> (i32, i32) {
    %c0_i32 = arith.constant 0 : i32
    return %arg0, %arg1 : i32, i32
  }
  func.func @transform_1(%arg0: i32, %arg1: i32) -> (i32, i32) {
    %c0_i32 = arith.constant 0 : i32
    %c0_i32_0 = arith.constant 0 : i32
    %c0_i32_1 = arith.constant 0 : i32
    return %c0_i32, %c0_i32_0 : i32, i32
  }
  func.func @transform_2(%arg0: i32, %arg1: i32) -> (i32, i32) {
    %c0_i32 = arith.constant 0 : i32
    %c0_i32_0 = arith.constant 0 : i32
    %c0_i32_1 = arith.constant 0 : i32
    return %c0_i32, %c0_i32_0 : i32, i32
  }
  func.func @transform_3(%arg0: i32, %arg1: i32) -> (i32, i32) {
    %c0_i32 = arith.constant 0 : i32
    %c0_i32_0 = arith.constant 0 : i32
    return %arg0, %c0_i32 : i32, i32
  }
}

</mosaic_0001>

<llo_original>
// kernel: tpu_custom_call.1
$region0: #{tpu_custom_call.1}
  #allocation0 [shape = 'u32[]', space=smem, size = 0x4, offset = 0x4, fixed_abs, tag = 'smem constant byte address 0x4 - core index']
  #allocation1 [shape = 'u32[144,128]{1,0:T(1,128)}', space=vmem, size = 0x12000, scoped, tag = 'internal scratch']
  #allocation2 [shape = 'f32[512,128]{1,0:T(8,128)}', space=vmem, size = 0x40000, scoped, tag = 'scratch operand']
  %s0 = inlined_call_operand.vmem [shape: bf16[512,72], index: 0, kind: input, shape index: {}]
  %s1 = inlined_call_operand.vmem [shape: bf16[72,128], index: 1, kind: input, shape index: {}]
  %s2 = inlined_call_operand.vmem [shape: f32[1,128], index: 2, kind: input, shape index: {}]
  %s3 = inlined_call_operand.hbm [shape: bf16[512,128], index: 3, kind: output, shape index: {}]
  %s4 = sld [smem:[#allocation0]]
  $region22: #{tpu_custom_call.1} parent=0
    _
  %s6 = ssub.s32 1, %s4
  %s7 = scalar_select 0, %s6, %s4
  $region1: #{tpu_custom_call.1} parent=0
    #allocation3 [shape = 'u8[131072]{0}', space=vmem, size = 0x20000, scoped, tag = 'output window, operand 0, single buffered']
    #allocation4 [shape = 's32[1]{0}', space=sflag, size = 0x4, scoped, tag = 'scoped memory for tpu_custom_call.1']
    %8 = vsyncpa [#allocation4], 0
    // Predicated region
    $region2: #{tpu_custom_call.1} parent=1 // pred_check
      _
    $region3: #{tpu_custom_call.1} parent=1 // pred_check_branch
      %10 = sbr.rel (0) target = $region5
    $region4: #{tpu_custom_call.1} parent=1 // pred_region
      _
    $region5: #{tpu_custom_call.1} parent=1 // pred_fallthru
      _
    // Predicated region
    $region6: #{tpu_custom_call.1} parent=1 // pred_check
      _
    $region7: #{tpu_custom_call.1} parent=1 // pred_check_branch
      %12 = sbr.rel (0) target = $region9
    $region8: #{tpu_custom_call.1} parent=1 // pred_region
      _
    $region9: #{tpu_custom_call.1} parent=1 // pred_fallthru
      _
    // Predicated region
    $region10: #{tpu_custom_call.1} parent=1 // pred_check
      _
    $region11: #{tpu_custom_call.1} parent=1 // pred_check_branch
      %14 = sbr.rel (0) target = $region13
    $region12: #{tpu_custom_call.1} parent=1 // pred_region
      _
    $region13: #{tpu_custom_call.1} parent=1 // pred_fallthru
      _
    %v16 = vld [vmem:[%s0] sm:$0xf]
    %v17 = vld [vmem:[%s0 + $0x4] sm:$0xf]
    %v18 = vld [vmem:[%s0 + $0x8] sm:$0xf]
    %v19 = vld [vmem:[%s0 + $0xc] sm:$0xf]
    %v20 = vld [vmem:[%s0 + $0x10] sm:$0xf]
    %v21 = vld [vmem:[%s0 + $0x14] sm:$0xf]
    %v22 = vld [vmem:[%s0 + $0x18] sm:$0xf]
    %v23 = vld [vmem:[%s0 + $0x1c] sm:$0xf]
    %v24 = vld [vmem:[%s0 + $0x20] sm:$0xf]
    %v25 = vld [vmem:[%s0 + $0x24] sm:$0xf]
    %v26 = vld [vmem:[%s0 + $0x28] sm:$0xf]
    %v27 = vld [vmem:[%s0 + $0x2c] sm:$0xf]
    %v28 = vld [vmem:[%s0 + $0x30] sm:$0xf]
    %v29 = vld [vmem:[%s0 + $0x34] sm:$0xf]
    %v30 = vld [vmem:[%s0 + $0x38] sm:$0xf]
    %v31 = vld [vmem:[%s0 + $0x3c] sm:$0xf]
    %v32 = vld [vmem:[%s0 + $0x40] sm:$0xf]
    %v33 = vld [vmem:[%s0 + $0x44] sm:$0xf]
    %v34 = vld [vmem:[%s0 + $0x48] sm:$0xf]
    %v35 = vld [vmem:[%s0 + $0x4c] sm:$0xf]
    %v36 = vld [vmem:[%s0 + $0x50] sm:$0xf]
    %v37 = vld [vmem:[%s0 + $0x54] sm:$0xf]
    %v38 = vld [vmem:[%s0 + $0x58] sm:$0xf]
    %v39 = vld [vmem:[%s0 + $0x5c] sm:$0xf]
    %v40 = vld [vmem:[%s0 + $0x60] sm:$0xf]
    %v41 = vld [vmem:[%s0 + $0x64] sm:$0xf]
    %v42 = vld [vmem:[%s0 + $0x68] sm:$0xf]
    %v43 = vld [vmem:[%s0 + $0x6c] sm:$0xf]
    %v44 = vld [vmem:[%s0 + $0x70] sm:$0xf]
    %v45 = vld [vmem:[%s0 + $0x74] sm:$0xf]
    %v46 = vld [vmem:[%s0 + $0x78] sm:$0xf]
    %v47 = vld [vmem:[%s0 + $0x7c] sm:$0xf]
    %v48 = vld [vmem:[%s0 + $0x80] sm:$0xf]
    %v49 = vld [vmem:[%s0 + $0x84] sm:$0xf]
    %v50 = vld [vmem:[%s0 + $0x88] sm:$0xf]
    %v51 = vld [vmem:[%s0 + $0x8c] sm:$0xf]
    %v52 = vld [vmem:[%s0 + $0x90] sm:$0xf]
    %v53 = vld [vmem:[%s0 + $0x94] sm:$0xf]
    %v54 = vld [vmem:[%s0 + $0x98] sm:$0xf]
    %v55 = vld [vmem:[%s0 + $0x9c] sm:$0xf]
    %v56 = vld [vmem:[%s0 + $0xa0] sm:$0xf]
    %v57 = vld [vmem:[%s0 + $0xa4] sm:$0xf]
    %v58 = vld [vmem:[%s0 + $0xa8] sm:$0xf]
    %v59 = vld [vmem:[%s0 + $0xac] sm:$0xf]
    %v60 = vld [vmem:[%s0 + $0xb0] sm:$0xf]
    %v61 = vld [vmem:[%s0 + $0xb4] sm:$0xf]
    %v62 = vld [vmem:[%s0 + $0xb8] sm:$0xf]
    %v63 = vld [vmem:[%s0 + $0xbc] sm:$0xf]
    %v64 = vld [vmem:[%s0 + $0xc0] sm:$0xf]
    %v65 = vld [vmem:[%s0 + $0xc4] sm:$0xf]
    %v66 = vld [vmem:[%s0 + $0xc8] sm:$0xf]
    %v67 = vld [vmem:[%s0 + $0xcc] sm:$0xf]
    %v68 = vld [vmem:[%s0 + $0xd0] sm:$0xf]
    %v69 = vld [vmem:[%s0 + $0xd4] sm:$0xf]
    %v70 = vld [vmem:[%s0 + $0xd8] sm:$0xf]
    %v71 = vld [vmem:[%s0 + $0xdc] sm:$0xf]
    %v72 = vld [vmem:[%s0 + $0xe0] sm:$0xf]
    %v73 = vld [vmem:[%s0 + $0xe4] sm:$0xf]
    %v74 = vld [vmem:[%s0 + $0xe8] sm:$0xf]
    %v75 = vld [vmem:[%s0 + $0xec] sm:$0xf]
    %v76 = vld [vmem:[%s0 + $0xf0] sm:$0xf]
    %v77 = vld [vmem:[%s0 + $0xf4] sm:$0xf]
    %v78 = vld [vmem:[%s0 + $0xf8] sm:$0xf]
    %v79 = vld [vmem:[%s0 + $0xfc] sm:$0xf]
    %v80 = vld [vmem:[%s1] sm:$0xf]
    %v81 = vld [vmem:[%s1 + $0x4] sm:$0xf]
    %v82 = vld [vmem:[%s1 + $0x8] sm:$0xf]
    %v83 = vld [vmem:[%s1 + $0xc] sm:$0xf]
    %v84 = vld [vmem:[%s1 + $0x10] sm:$0xf]
    %v85 = vld [vmem:[%s1 + $0x14] sm:$0xf]
    %v86 = vld [vmem:[%s1 + $0x18] sm:$0xf]
    %v87 = vld [vmem:[%s1 + $0x1c] sm:$0xf]
    %v88 = vld [vmem:[%s1 + $0x20] sm:$0xf]
    %v89 = vld [vmem:[%s2] sm:$0x1]
    %v91 = vlaneseq
    %v92 = vshrl.u32 %v91, 7
    %v93 = vsub.s32 0, %v92
    %v94 = vrot.slane %v89, %v93
    %v160 = vunpack.c.l.b16 %v16
    %v161 = vunpack.c.l.b16 %v17
    %v162 = vunpack.c.l.b16 %v18
    %v163 = vunpack.c.l.b16 %v19
    %v164 = vunpack.c.l.b16 %v20
    %v165 = vunpack.c.l.b16 %v21
    %v166 = vunpack.c.l.b16 %v22
    %v167 = vunpack.c.l.b16 %v23
    %v168 = vunpack.c.l.b16 %v24
    %v169 = vunpack.c.l.b16 %v25
    %v170 = vunpack.c.l.b16 %v26
    %v171 = vunpack.c.l.b16 %v27
    %v172 = vunpack.c.l.b16 %v28
    %v173 = vunpack.c.l.b16 %v29
    %v174 = vunpack.c.l.b16 %v30
    %v175 = vunpack.c.l.b16 %v31
    %v176 = vunpack.c.l.b16 %v32
    %v177 = vunpack.c.l.b16 %v33
    %v178 = vunpack.c.l.b16 %v34
    %v179 = vunpack.c.l.b16 %v35
    %v180 = vunpack.c.l.b16 %v36
    %v181 = vunpack.c.l.b16 %v37
    %v182 = vunpack.c.l.b16 %v38
    %v183 = vunpack.c.l.b16 %v39
    %v184 = vunpack.c.l.b16 %v40
    %v185 = vunpack.c.l.b16 %v41
    %v186 = vunpack.c.l.b16 %v42
    %v187 = vunpack.c.l.b16 %v43
    %v188 = vunpack.c.l.b16 %v44
    %v189 = vunpack.c.l.b16 %v45
    %v190 = vunpack.c.l.b16 %v46
    %v191 = vunpack.c.l.b16 %v47
    %v192 = vunpack.c.l.b16 %v48
    %v193 = vunpack.c.l.b16 %v49
    %v194 = vunpack.c.l.b16 %v50
    %v195 = vunpack.c.l.b16 %v51
    %v196 = vunpack.c.l.b16 %v52
    %v197 = vunpack.c.l.b16 %v53
    %v198 = vunpack.c.l.b16 %v54
    %v199 = vunpack.c.l.b16 %v55
    %v200 = vunpack.c.l.b16 %v56
    %v201 = vunpack.c.l.b16 %v57
    %v202 = vunpack.c.l.b16 %v58
    %v203 = vunpack.c.l.b16 %v59
    %v204 = vunpack.c.l.b16 %v60
    %v205 = vunpack.c.l.b16 %v61
    %v206 = vunpack.c.l.b16 %v62
    %v207 = vunpack.c.l.b16 %v63
    %v208 = vunpack.c.l.b16 %v64
    %v209 = vunpack.c.l.b16 %v65
    %v210 = vunpack.c.l.b16 %v66
    %v211 = vunpack.c.l.b16 %v67
    %v212 = vunpack.c.l.b16 %v68
    %v213 = vunpack.c.l.b16 %v69
    %v214 = vunpack.c.l.b16 %v70
    %v215 = vunpack.c.l.b16 %v71
    %v216 = vunpack.c.l.b16 %v72
    %v217 = vunpack.c.l.b16 %v73
    %v218 = vunpack.c.l.b16 %v74
    %v219 = vunpack.c.l.b16 %v75
    %v220 = vunpack.c.l.b16 %v76
    %v221 = vunpack.c.l.b16 %v77
    %v222 = vunpack.c.l.b16 %v78
    %v223 = vunpack.c.l.b16 %v79
    %v224 = vpack.c.b16 %v161, %v160
    %v225 = vpack.c.b16 %v163, %v162
    %v226 = vpack.c.b16 %v165, %v164
    %v227 = vpack.c.b16 %v167, %v166
    %v228 = vpack.c.b16 %v169, %v168
    %v229 = vpack.c.b16 %v171, %v170
    %v230 = vpack.c.b16 %v173, %v172
    %v231 = vpack.c.b16 %v175, %v174
    %v232 = vpack.c.b16 %v177, %v176
    %v233 = vpack.c.b16 %v179, %v178
    %v234 = vpack.c.b16 %v181, %v180
    %v235 = vpack.c.b16 %v183, %v182
    %v236 = vpack.c.b16 %v185, %v184
    %v237 = vpack.c.b16 %v187, %v186
    %v238 = vpack.c.b16 %v189, %v188
    %v239 = vpack.c.b16 %v191, %v190
    %v240 = vpack.c.b16 %v193, %v192
    %v241 = vpack.c.b16 %v195, %v194
    %v242 = vpack.c.b16 %v197, %v196
    %v243 = vpack.c.b16 %v199, %v198
    %v244 = vpack.c.b16 %v201, %v200
    %v245 = vpack.c.b16 %v203, %v202
    %v246 = vpack.c.b16 %v205, %v204
    %v247 = vpack.c.b16 %v207, %v206
    %v248 = vpack.c.b16 %v209, %v208
    %v249 = vpack.c.b16 %v211, %v210
    %v250 = vpack.c.b16 %v213, %v212
    %v251 = vpack.c.b16 %v215, %v214
    %v252 = vpack.c.b16 %v217, %v216
    %v253 = vpack.c.b16 %v219, %v218
    %v254 = vpack.c.b16 %v221, %v220
    %v255 = vpack.c.b16 %v223, %v222
    %v265 = vunpack.c.l.b16 %v80
    %v266 = vunpack.c.l.b16 %v81
    %v267 = vunpack.c.l.b16 %v82
    %v268 = vunpack.c.l.b16 %v83
    %v269 = vunpack.c.l.b16 %v84
    %v270 = vunpack.c.l.b16 %v85
    %v271 = vunpack.c.l.b16 %v86
    %v272 = vunpack.c.l.b16 %v87
    %v273 = vunpack.c.l.b16 %v88
    %v274 = vpack.c.b16 %v266, %v265
    %v275 = vpack.c.b16 %v268, %v267
    %v276 = vpack.c.b16 %v270, %v269
    %v277 = vpack.c.b16 %v272, %v271
    %v278 = vpack.c.b16 %v273, %v273
    %vm283 = vcmask 588800
    %v285 = vsel %vm283, %v224, 0
    %v288 = vsel %vm283, %v225, 0
    %v291 = vsel %vm283, %v226, 0
    %v294 = vsel %vm283, %v227, 0
    %v297 = vsel %vm283, %v228, 0
    %v300 = vsel %vm283, %v229, 0
    %v303 = vsel %vm283, %v230, 0
    %v306 = vsel %vm283, %v231, 0
    %v309 = vsel %vm283, %v232, 0
    %v312 = vsel %vm283, %v233, 0
    %v315 = vsel %vm283, %v234, 0
    %v318 = vsel %vm283, %v235, 0
    %v321 = vsel %vm283, %v236, 0
    %v324 = vsel %vm283, %v237, 0
    %v327 = vsel %vm283, %v238, 0
    %v330 = vsel %vm283, %v239, 0
    %v333 = vsel %vm283, %v240, 0
    %v336 = vsel %vm283, %v241, 0
    %v339 = vsel %vm283, %v242, 0
    %v342 = vsel %vm283, %v243, 0
    %v345 = vsel %vm283, %v244, 0
    %v348 = vsel %vm283, %v245, 0
    %v351 = vsel %vm283, %v246, 0
    %v354 = vsel %vm283, %v247, 0
    %v357 = vsel %vm283, %v248, 0
    %v360 = vsel %vm283, %v249, 0
    %v363 = vsel %vm283, %v250, 0
    %v366 = vsel %vm283, %v251, 0
    %v369 = vsel %vm283, %v252, 0
    %v372 = vsel %vm283, %v253, 0
    %v375 = vsel %vm283, %v254, 0
    %v378 = vsel %vm283, %v255, 0
    %vm380 = vcmask 1043456
    %v382 = vsel %vm380, %v278, 0
    %384 = vmatprep.subr.bf16.mxu0 0
    %385 = vmatpush1.bf16.msra.mxu0 %v274
    %386 = vmatprep.subr.bf16.mxu0 0
    %387 = vmatpush1.bf16.msra.mxu0 %v275
    %388 = vmatprep.subr.bf16.mxu0 0
    %389 = vmatpush1.bf16.msra.mxu0 %v276
    %390 = vmatprep.subr.bf16.mxu0 0
    %391 = vmatpush1.bf16.msra.mxu0 %v277
    %392 = vmatprep.subr.bf16.mxu0 0
    %393 = vmatpush1.bf16.msra.mxu0 %v382
    %394 = vmatprep.subr.bf16.mxu0 0
    %395 = vmatpush1.bf16.msra.mxu0 0
    %396 = vmatprep.subr.bf16.mxu0 0
    %397 = vmatpush1.bf16.msra.mxu0 0
    %398 = vmatprep.subr.bf16.mxu0 0
    %399 = vmatpush1.bf16.msra.mxu0 0
    %400 = vmatprep.subr.bf16.mxu0 0
    %401 = vmatpush1.bf16.msra.mxu0 0
    %402 = vmatprep.subr.bf16.mxu0 0
    %403 = vmatpush1.bf16.msra.mxu0 0
    %404 = vmatprep.subr.bf16.mxu0 0
    %405 = vmatpush1.bf16.msra.mxu0 0
    %406 = vmatprep.subr.bf16.mxu0 0
    %407 = vmatpush1.bf16.msra.mxu0 0
    %408 = vmatprep.subr.bf16.mxu0 0
    %409 = vmatpush1.bf16.msra.mxu0 0
    %410 = vmatprep.subr.bf16.mxu0 0
    %411 = vmatpush1.bf16.msra.mxu0 0
    %412 = vmatprep.subr.bf16.mxu0 0
    %413 = vmatpush1.bf16.msra.mxu0 0
    %414 = vmatprep.subr.bf16.mxu0 0
    %415 = vmatpush1.bf16.msra.mxu0 0
    %416 = vmatprep.mubr.bf16.mxu0 0
    %417 = vmatmul.mubr.bf16.gmra.mrb[0].mxu0 %v285
    %v418 = vpop.f32.mrb[0].mxu0
    %v419 = vadd.f32 %v94, %v418
    %v420 = vpop.f32.mrb[0].mxu0
    %v421 = vpop.f32.mrb[0].mxu0
    %v422 = vadd.f32 %v94, %v421
    %v423 = vpop.f32.mrb[0].mxu0
    %424 = vmatprep.mubr.bf16.mxu0 0
    %425 = vmatmul.mubr.bf16.gmra.mrb[0].mxu0 %v288
    %v426 = vpop.f32.mrb[0].mxu0
    %v427 = vadd.f32 %v94, %v426
    %v428 = vpop.f32.mrb[0].mxu0
    %v429 = vpop.f32.mrb[0].mxu0
    %v430 = vadd.f32 %v94, %v429
    %v431 = vpop.f32.mrb[0].mxu0
    %432 = vmatprep.mubr.bf16.mxu0 0
    %433 = vmatmul.mubr.bf16.gmra.mrb[0].mxu0 %v291
    %v434 = vpop.f32.mrb[0].mxu0
    %v435 = vadd.f32 %v94, %v434
    %v436 = vpop.f32.mrb[0].mxu0
    %v437 = vpop.f32.mrb[0].mxu0
    %v438 = vadd.f32 %v94, %v437
    %v439 = vpop.f32.mrb[0].mxu0
    %440 = vmatprep.mubr.bf16.mxu0 0
    %441 = vmatmul.mubr.bf16.gmra.mrb[0].mxu0 %v294
    %v442 = vpop.f32.mrb[0].mxu0
    %v443 = vadd.f32 %v94, %v442
    %v444 = vpop.f32.mrb[0].mxu0
    %v445 = vpop.f32.mrb[0].mxu0
    %v446 = vadd.f32 %v94, %v445
    %v447 = vpop.f32.mrb[0].mxu0
    %448 = vmatprep.mubr.bf16.mxu0 0
    %449 = vmatmul.mubr.bf16.gmra.mrb[0].mxu0 %v297
    %v450 = vpop.f32.mrb[0].mxu0
    %v451 = vadd.f32 %v94, %v450
    %v452 = vpop.f32.mrb[0].mxu0
    %v453 = vpop.f32.mrb[0].mxu0
    %v454 = vadd.f32 %v94, %v453
    %v455 = vpop.f32.mrb[0].mxu0
    %456 = vmatprep.mubr.bf16.mxu0 0
    %457 = vmatmul.mubr.bf16.gmra.mrb[0].mxu0 %v300
    %v458 = vpop.f32.mrb[0].mxu0
    %v459 = vadd.f32 %v94, %v458
    %v460 = vpop.f32.mrb[0].mxu0
    %v461 = vpop.f32.mrb[0].mxu0
    %v462 = vadd.f32 %v94, %v461
    %v463 = vpop.f32.mrb[0].mxu0
    %464 = vmatprep.mubr.bf16.mxu0 0
    %465 = vmatmul.mubr.bf16.gmra.mrb[0].mxu0 %v303
    %v466 = vpop.f32.mrb[0].mxu0
    %v467 = vadd.f32 %v94, %v466
    %v468 = vpop.f32.mrb[0].mxu0
    %v469 = vpop.f32.mrb[0].mxu0
    %v470 = vadd.f32 %v94, %v469
    %v471 = vpop.f32.mrb[0].mxu0
    %472 = vmatprep.mubr.bf16.mxu0 0
    %473 = vmatmul.mubr.bf16.gmra.mrb[0].mxu0 %v306
    %v474 = vpop.f32.mrb[0].mxu0
    %v475 = vadd.f32 %v94, %v474
    %v476 = vpop.f32.mrb[0].mxu0
    %v477 = vpop.f32.mrb[0].mxu0
    %v478 = vadd.f32 %v94, %v477
    %v479 = vpop.f32.mrb[0].mxu0
    %480 = vmatprep.mubr.bf16.mxu0 0
    %481 = vmatmul.mubr.bf16.gmra.mrb[0].mxu0 %v309
    %v482 = vpop.f32.mrb[0].mxu0
    %v483 = vadd.f32 %v94, %v482
    %v484 = vpop.f32.mrb[0].mxu0
    %v485 = vpop.f32.mrb[0].mxu0
    %v486 = vadd.f32 %v94, %v485
    %v487 = vpop.f32.mrb[0].mxu0
    %488 = vmatprep.mubr.bf16.mxu0 0
    %489 = vmatmul.mubr.bf16.gmra.mrb[0].mxu0 %v312
    %v490 = vpop.f32.mrb[0].mxu0
    %v491 = vadd.f32 %v94, %v490
    %v492 = vpop.f32.mrb[0].mxu0
    %v493 = vpop.f32.mrb[0].mxu0
    %v494 = vadd.f32 %v94, %v493
    %v495 = vpop.f32.mrb[0].mxu0
    %496 = vmatprep.mubr.bf16.mxu0 0
    %497 = vmatmul.mubr.bf16.gmra.mrb[0].mxu0 %v315
    %v498 = vpop.f32.mrb[0].mxu0
    %v499 = vadd.f32 %v94, %v498
    %v500 = vpop.f32.mrb[0].mxu0
    %v501 = vpop.f32.mrb[0].mxu0
    %v502 = vadd.f32 %v94, %v501
    %v503 = vpop.f32.mrb[0].mxu0
    %504 = vmatprep.mubr.bf16.mxu0 0
    %505 = vmatmul.mubr.bf16.gmra.mrb[0].mxu0 %v318
    %v506 = vpop.f32.mrb[0].mxu0
    %v507 = vadd.f32 %v94, %v506
    %v508 = vpop.f32.mrb[0].mxu0
    %v509 = vpop.f32.mrb[0].mxu0
    %v510 = vadd.f32 %v94, %v509
    %v511 = vpop.f32.mrb[0].mxu0
    %512 = vmatprep.mubr.bf16.mxu0 0
    %513 = vmatmul.mubr.bf16.gmra.mrb[0].mxu0 %v321
    %v514 = vpop.f32.mrb[0].mxu0
    %v515 = vadd.f32 %v94, %v514
    %v516 = vpop.f32.mrb[0].mxu0
    %v517 = vpop.f32.mrb[0].mxu0
    %v518 = vadd.f32 %v94, %v517
    %v519 = vpop.f32.mrb[0].mxu0
    %520 = vmatprep.mubr.bf16.mxu0 0
    %521 = vmatmul.mubr.bf16.gmra.mrb[0].mxu0 %v324
    %v522 = vpop.f32.mrb[0].mxu0
    %v523 = vadd.f32 %v94, %v522
    %v524 = vpop.f32.mrb[0].mxu0
    %v525 = vpop.f32.mrb[0].mxu0
    %v526 = vadd.f32 %v94, %v525
    %v527 = vpop.f32.mrb[0].mxu0
    %528 = vmatprep.mubr.bf16.mxu0 0
    %529 = vmatmul.mubr.bf16.gmra.mrb[0].mxu0 %v327
    %v530 = vpop.f32.mrb[0].mxu0
    %v531 = vadd.f32 %v94, %v530
    %v532 = vpop.f32.mrb[0].mxu0
    %v533 = vpop.f32.mrb[0].mxu0
    %v534 = vadd.f32 %v94, %v533
    %v535 = vpop.f32.mrb[0].mxu0
    %536 = vmatprep.mubr.bf16.mxu0 0
    %537 = vmatmul.mubr.bf16.gmra.mrb[0].mxu0 %v330
    %v538 = vpop.f32.mrb[0].mxu0
    %v539 = vadd.f32 %v94, %v538
    %v540 = vpop.f32.mrb[0].mxu0
    %v541 = vpop.f32.mrb[0].mxu0
    %v542 = vadd.f32 %v94, %v541
    %v543 = vpop.f32.mrb[0].mxu0
    %544 = vmatprep.mubr.bf16.mxu0 0
    %545 = vmatmul.mubr.bf16.gmra.mrb[0].mxu0 %v333
    %v546 = vpop.f32.mrb[0].mxu0
    %v547 = vadd.f32 %v94, %v546
    %v548 = vpop.f32.mrb[0].mxu0
    %v549 = vpop.f32.mrb[0].mxu0
    %v550 = vadd.f32 %v94, %v549
    %v551 = vpop.f32.mrb[0].mxu0
    %552 = vmatprep.mubr.bf16.mxu0 0
    %553 = vmatmul.mubr.bf16.gmra.mrb[0].mxu0 %v336
    %v554 = vpop.f32.mrb[0].mxu0
    %v555 = vadd.f32 %v94, %v554
    %v556 = vpop.f32.mrb[0].mxu0
    %v557 = vpop.f32.mrb[0].mxu0
    %v558 = vadd.f32 %v94, %v557
    %v559 = vpop.f32.mrb[0].mxu0
    %560 = vmatprep.mubr.bf16.mxu0 0
    %561 = vmatmul.mubr.bf16.gmra.mrb[0].mxu0 %v339
    %v562 = vpop.f32.mrb[0].mxu0
    %v563 = vadd.f32 %v94, %v562
    %v564 = vpop.f32.mrb[0].mxu0
    %v565 = vpop.f32.mrb[0].mxu0
    %v566 = vadd.f32 %v94, %v565
    %v567 = vpop.f32.mrb[0].mxu0
    %568 = vmatprep.mubr.bf16.mxu0 0
    %569 = vmatmul.mubr.bf16.gmra.mrb[0].mxu0 %v342
    %v570 = vpop.f32.mrb[0].mxu0
    %v571 = vadd.f32 %v94, %v570
    %v572 = vpop.f32.mrb[0].mxu0
    %v573 = vpop.f32.mrb[0].mxu0
    %v574 = vadd.f32 %v94, %v573
    %v575 = vpop.f32.mrb[0].mxu0
    %576 = vmatprep.mubr.bf16.mxu0 0
    %577 = vmatmul.mubr.bf16.gmra.mrb[0].mxu0 %v345
    %v578 = vpop.f32.mrb[0].mxu0
    %v579 = vadd.f32 %v94, %v578
    %v580 = vpop.f32.mrb[0].mxu0
    %v581 = vpop.f32.mrb[0].mxu0
    %v582 = vadd.f32 %v94, %v581
    %v583 = vpop.f32.mrb[0].mxu0
    %584 = vmatprep.mubr.bf16.mxu0 0
    %585 = vmatmul.mubr.bf16.gmra.mrb[0].mxu0 %v348
    %v586 = vpop.f32.mrb[0].mxu0
    %v587 = vadd.f32 %v94, %v586
    %v588 = vpop.f32.mrb[0].mxu0
    %v589 = vpop.f32.mrb[0].mxu0
    %v590 = vadd.f32 %v94, %v589
    %v591 = vpop.f32.mrb[0].mxu0
    %592 = vmatprep.mubr.bf16.mxu0 0
    %593 = vmatmul.mubr.bf16.gmra.mrb[0].mxu0 %v351
    %v594 = vpop.f32.mrb[0].mxu0
    %v595 = vadd.f32 %v94, %v594
    %v596 = vpop.f32.mrb[0].mxu0
    %v597 = vpop.f32.mrb[0].mxu0
    %v598 = vadd.f32 %v94, %v597
    %v599 = vpop.f32.mrb[0].mxu0
    %600 = vmatprep.mubr.bf16.mxu0 0
    %601 = vmatmul.mubr.bf16.gmra.mrb[0].mxu0 %v354
    %v602 = vpop.f32.mrb[0].mxu0
    %v603 = vadd.f32 %v94, %v602
    %v604 = vpop.f32.mrb[0].mxu0
    %v605 = vpop.f32.mrb[0].mxu0
    %v606 = vadd.f32 %v94, %v605
    %v607 = vpop.f32.mrb[0].mxu0
    %608 = vmatprep.mubr.bf16.mxu0 0
    %609 = vmatmul.mubr.bf16.gmra.mrb[0].mxu0 %v357
    %v610 = vpop.f32.mrb[0].mxu0
    %v611 = vadd.f32 %v94, %v610
    %v612 = vpop.f32.mrb[0].mxu0
    %v613 = vpop.f32.mrb[0].mxu0
    %v614 = vadd.f32 %v94, %v613
    %v615 = vpop.f32.mrb[0].mxu0
    %616 = vmatprep.mubr.bf16.mxu0 0
    %617 = vmatmul.mubr.bf16.gmra.mrb[0].mxu0 %v360
    %v618 = vpop.f32.mrb[0].mxu0
    %v619 = vadd.f32 %v94, %v618
    %v620 = vpop.f32.mrb[0].mxu0
    %v621 = vpop.f32.mrb[0].mxu0
    %v622 = vadd.f32 %v94, %v621
    %v623 = vpop.f32.mrb[0].mxu0
    %624 = vmatprep.mubr.bf16.mxu0 0
    %625 = vmatmul.mubr.bf16.gmra.mrb[0].mxu0 %v363
    %v626 = vpop.f32.mrb[0].mxu0
    %v627 = vadd.f32 %v94, %v626
    %v628 = vpop.f32.mrb[0].mxu0
    %v629 = vpop.f32.mrb[0].mxu0
    %v630 = vadd.f32 %v94, %v629
    %v631 = vpop.f32.mrb[0].mxu0
    %632 = vmatprep.mubr.bf16.mxu0 0
    %633 = vmatmul.mubr.bf16.gmra.mrb[0].mxu0 %v366
    %v634 = vpop.f32.mrb[0].mxu0
    %v635 = vadd.f32 %v94, %v634
    %v636 = vpop.f32.mrb[0].mxu0
    %v637 = vpop.f32.mrb[0].mxu0
    %v638 = vadd.f32 %v94, %v637
    %v639 = vpop.f32.mrb[0].mxu0
    %640 = vmatprep.mubr.bf16.mxu0 0
    %641 = vmatmul.mubr.bf16.gmra.mrb[0].mxu0 %v369
    %v642 = vpop.f32.mrb[0].mxu0
    %v643 = vadd.f32 %v94, %v642
    %v644 = vpop.f32.mrb[0].mxu0
    %v645 = vpop.f32.mrb[0].mxu0
    %v646 = vadd.f32 %v94, %v645
    %v647 = vpop.f32.mrb[0].mxu0
    %648 = vmatprep.mubr.bf16.mxu0 0
    %649 = vmatmul.mubr.bf16.gmra.mrb[0].mxu0 %v372
    %v650 = vpop.f32.mrb[0].mxu0
    %v651 = vadd.f32 %v94, %v650
    %v652 = vpop.f32.mrb[0].mxu0
    %v653 = vpop.f32.mrb[0].mxu0
    %v654 = vadd.f32 %v94, %v653
    %v655 = vpop.f32.mrb[0].mxu0
    %656 = vmatprep.mubr.bf16.mxu0 0
    %657 = vmatmul.mubr.bf16.gmra.mrb[0].mxu0 %v375
    %v658 = vpop.f32.mrb[0].mxu0
    %v659 = vadd.f32 %v94, %v658
    %v660 = vpop.f32.mrb[0].mxu0
    %v661 = vpop.f32.mrb[0].mxu0
    %v662 = vadd.f32 %v94, %v661
    %v663 = vpop.f32.mrb[0].mxu0
    %664 = vmatprep.mubr.bf16.mxu0 0
    %665 = vmatmul.mubr.bf16.gmra.mrb[0].mxu0 %v378
    %v666 = vpop.f32.mrb[0].mxu0
    %v667 = vadd.f32 %v94, %v666
    %v668 = vpop.f32.mrb[0].mxu0
    %v669 = vpop.f32.mrb[0].mxu0
    %v670 = vadd.f32 %v94, %v669
    %v671 = vpop.f32.mrb[0].mxu0
    %672 = vdwg.mxu0
    %v673 = vmax.f32 %v419, 0.0
    %v674 = vmax.f32 %v422, 0.0
    %v675 = vmax.f32 %v427, 0.0
    %v676 = vmax.f32 %v430, 0.0
    %v677 = vmax.f32 %v435, 0.0
    %v678 = vmax.f32 %v438, 0.0
    %v679 = vmax.f32 %v443, 0.0
    %v680 = vmax.f32 %v446, 0.0
    %v681 = vmax.f32 %v451, 0.0
    %v682 = vmax.f32 %v454, 0.0
    %v683 = vmax.f32 %v459, 0.0
    %v684 = vmax.f32 %v462, 0.0
    %v685 = vmax.f32 %v467, 0.0
    %v686 = vmax.f32 %v470, 0.0
    %v687 = vmax.f32 %v475, 0.0
    %v688 = vmax.f32 %v478, 0.0
    %v689 = vmax.f32 %v483, 0.0
    %v690 = vmax.f32 %v486, 0.0
    %v691 = vmax.f32 %v491, 0.0
    %v692 = vmax.f32 %v494, 0.0
    %v693 = vmax.f32 %v499, 0.0
    %v694 = vmax.f32 %v502, 0.0
    %v695 = vmax.f32 %v507, 0.0
    %v696 = vmax.f32 %v510, 0.0
    %v697 = vmax.f32 %v515, 0.0
    %v698 = vmax.f32 %v518, 0.0
    %v699 = vmax.f32 %v523, 0.0
    %v700 = vmax.f32 %v526, 0.0
    %v701 = vmax.f32 %v531, 0.0
    %v702 = vmax.f32 %v534, 0.0
    %v703 = vmax.f32 %v539, 0.0
    %v704 = vmax.f32 %v542, 0.0
    %v705 = vmax.f32 %v547, 0.0
    %v706 = vmax.f32 %v550, 0.0
    %v707 = vmax.f32 %v555, 0.0
    %v708 = vmax.f32 %v558, 0.0
    %v709 = vmax.f32 %v563, 0.0
    %v710 = vmax.f32 %v566, 0.0
    %v711 = vmax.f32 %v571, 0.0
    %v712 = vmax.f32 %v574, 0.0
    %v713 = vmax.f32 %v579, 0.0
    %v714 = vmax.f32 %v582, 0.0
    %v715 = vmax.f32 %v587, 0.0
    %v716 = vmax.f32 %v590, 0.0
    %v717 = vmax.f32 %v595, 0.0
    %v718 = vmax.f32 %v598, 0.0
    %v719 = vmax.f32 %v603, 0.0
    %v720 = vmax.f32 %v606, 0.0
    %v721 = vmax.f32 %v611, 0.0
    %v722 = vmax.f32 %v614, 0.0
    %v723 = vmax.f32 %v619, 0.0
    %v724 = vmax.f32 %v622, 0.0
    %v725 = vmax.f32 %v627, 0.0
    %v726 = vmax.f32 %v630, 0.0
    %v727 = vmax.f32 %v635, 0.0
    %v728 = vmax.f32 %v638, 0.0
    %v729 = vmax.f32 %v643, 0.0
    %v730 = vmax.f32 %v646, 0.0
    %v731 = vmax.f32 %v651, 0.0
    %v732 = vmax.f32 %v654, 0.0
    %v733 = vmax.f32 %v659, 0.0
    %v734 = vmax.f32 %v662, 0.0
    %v735 = vmax.f32 %v667, 0.0
    %v736 = vmax.f32 %v670, 0.0
    %v737 = vpack.c.bf16 %v674, %v673
    %v738 = vpack.c.bf16 %v676, %v675
    %v739 = vpack.c.bf16 %v678, %v677
    %v740 = vpack.c.bf16 %v680, %v679
    %v741 = vpack.c.bf16 %v682, %v681
    %v742 = vpack.c.bf16 %v684, %v683
    %v743 = vpack.c.bf16 %v686, %v685
    %v744 = vpack.c.bf16 %v688, %v687
    %v745 = vpack.c.bf16 %v690, %v689
    %v746 = vpack.c.bf16 %v692, %v691
    %v747 = vpack.c.bf16 %v694, %v693
    %v748 = vpack.c.bf16 %v696, %v695
    %v749 = vpack.c.bf16 %v698, %v697
    %v750 = vpack.c.bf16 %v700, %v699
    %v751 = vpack.c.bf16 %v702, %v701
    %v752 = vpack.c.bf16 %v704, %v703
    %v753 = vpack.c.bf16 %v706, %v705
    %v754 = vpack.c.bf16 %v708, %v707
    %v755 = vpack.c.bf16 %v710, %v709
    %v756 = vpack.c.bf16 %v712, %v711
    %v757 = vpack.c.bf16 %v714, %v713
    %v758 = vpack.c.bf16 %v716, %v715
    %v759 = vpack.c.bf16 %v718, %v717
    %v760 = vpack.c.bf16 %v720, %v719
    %v761 = vpack.c.bf16 %v722, %v721
    %v762 = vpack.c.bf16 %v724, %v723
    %v763 = vpack.c.bf16 %v726, %v725
    %v764 = vpack.c.bf16 %v728, %v727
    %v765 = vpack.c.bf16 %v730, %v729
    %v766 = vpack.c.bf16 %v732, %v731
    %v767 = vpack.c.bf16 %v734, %v733
    %v768 = vpack.c.bf16 %v736, %v735
    %v801 = vunpack.c.l.b16 %v737
    %v802 = vunpack.c.h.b16 %v737
    %v803 = vunpack.c.l.b16 %v738
    %v804 = vunpack.c.h.b16 %v738
    %v805 = vunpack.c.l.b16 %v739
    %v806 = vunpack.c.h.b16 %v739
    %v807 = vunpack.c.l.b16 %v740
    %v808 = vunpack.c.h.b16 %v740
    %v809 = vunpack.c.l.b16 %v741
    %v810 = vunpack.c.h.b16 %v741
    %v811 = vunpack.c.l.b16 %v742
    %v812 = vunpack.c.h.b16 %v742
    %v813 = vunpack.c.l.b16 %v743
    %v814 = vunpack.c.h.b16 %v743
    %v815 = vunpack.c.l.b16 %v744
    %v816 = vunpack.c.h.b16 %v744
    %v817 = vunpack.c.l.b16 %v745
    %v818 = vunpack.c.h.b16 %v745
    %v819 = vunpack.c.l.b16 %v746
    %v820 = vunpack.c.h.b16 %v746
    %v821 = vunpack.c.l.b16 %v747
    %v822 = vunpack.c.h.b16 %v747
    %v823 = vunpack.c.l.b16 %v748
    %v824 = vunpack.c.h.b16 %v748
    %v825 = vunpack.c.l.b16 %v749
    %v826 = vunpack.c.h.b16 %v749
    %v827 = vunpack.c.l.b16 %v750
    %v828 = vunpack.c.h.b16 %v750
    %v829 = vunpack.c.l.b16 %v751
    %v830 = vunpack.c.h.b16 %v751
    %v831 = vunpack.c.l.b16 %v752
    %v832 = vunpack.c.h.b16 %v752
    %v833 = vunpack.c.l.b16 %v753
    %v834 = vunpack.c.h.b16 %v753
    %v835 = vunpack.c.l.b16 %v754
    %v836 = vunpack.c.h.b16 %v754
    %v837 = vunpack.c.l.b16 %v755
    %v838 = vunpack.c.h.b16 %v755
    %v839 = vunpack.c.l.b16 %v756
    %v840 = vunpack.c.h.b16 %v756
    %v841 = vunpack.c.l.b16 %v757
    %v842 = vunpack.c.h.b16 %v757
    %v843 = vunpack.c.l.b16 %v758
    %v844 = vunpack.c.h.b16 %v758
    %v845 = vunpack.c.l.b16 %v759
    %v846 = vunpack.c.h.b16 %v759
    %v847 = vunpack.c.l.b16 %v760
    %v848 = vunpack.c.h.b16 %v760
    %v849 = vunpack.c.l.b16 %v761
    %v850 = vunpack.c.h.b16 %v761
    %v851 = vunpack.c.l.b16 %v762
    %v852 = vunpack.c.h.b16 %v762
    %v853 = vunpack.c.l.b16 %v763
    %v854 = vunpack.c.h.b16 %v763
    %v855 = vunpack.c.l.b16 %v764
    %v856 = vunpack.c.h.b16 %v764
    %v857 = vunpack.c.l.b16 %v765
    %v858 = vunpack.c.h.b16 %v765
    %v859 = vunpack.c.l.b16 %v766
    %v860 = vunpack.c.h.b16 %v766
    %v861 = vunpack.c.l.b16 %v767
    %v862 = vunpack.c.h.b16 %v767
    %v863 = vunpack.c.l.b16 %v768
    %v864 = vunpack.c.h.b16 %v768
    %v865 = vpack.c.b16 %v801, %v801
    %v866 = vpack.c.b16 %v802, %v802
    %v867 = vpack.c.b16 %v803, %v803
    %v868 = vpack.c.b16 %v804, %v804
    %v869 = vpack.c.b16 %v805, %v805
    %v870 = vpack.c.b16 %v806, %v806
    %v871 = vpack.c.b16 %v807, %v807
    %v872 = vpack.c.b16 %v808, %v808
    %v873 = vpack.c.b16 %v809, %v809
    %v874 = vpack.c.b16 %v810, %v810
    %v875 = vpack.c.b16 %v811, %v811
    %v876 = vpack.c.b16 %v812, %v812
    %v877 = vpack.c.b16 %v813, %v813
    %v878 = vpack.c.b16 %v814, %v814
    %v879 = vpack.c.b16 %v815, %v815
    %v880 = vpack.c.b16 %v816, %v816
    %v881 = vpack.c.b16 %v817, %v817
    %v882 = vpack.c.b16 %v818, %v818
    %v883 = vpack.c.b16 %v819, %v819
    %v884 = vpack.c.b16 %v820, %v820
    %v885 = vpack.c.b16 %v821, %v821
    %v886 = vpack.c.b16 %v822, %v822
    %v887 = vpack.c.b16 %v823, %v823
    %v888 = vpack.c.b16 %v824, %v824
    %v889 = vpack.c.b16 %v825, %v825
    %v890 = vpack.c.b16 %v826, %v826
    %v891 = vpack.c.b16 %v827, %v827
    %v892 = vpack.c.b16 %v828, %v828
    %v893 = vpack.c.b16 %v829, %v829
    %v894 = vpack.c.b16 %v830, %v830
    %v895 = vpack.c.b16 %v831, %v831
    %v896 = vpack.c.b16 %v832, %v832
    %v897 = vpack.c.b16 %v833, %v833
    %v898 = vpack.c.b16 %v834, %v834
    %v899 = vpack.c.b16 %v835, %v835
    %v900 = vpack.c.b16 %v836, %v836
    %v901 = vpack.c.b16 %v837, %v837
    %v902 = vpack.c.b16 %v838, %v838
    %v903 = vpack.c.b16 %v839, %v839
    %v904 = vpack.c.b16 %v840, %v840
    %v905 = vpack.c.b16 %v841, %v841
    %v906 = vpack.c.b16 %v842, %v842
    %v907 = vpack.c.b16 %v843, %v843
    %v908 = vpack.c.b16 %v844, %v844
    %v909 = vpack.c.b16 %v845, %v845
    %v910 = vpack.c.b16 %v846, %v846
    %v911 = vpack.c.b16 %v847, %v847
    %v912 = vpack.c.b16 %v848, %v848
    %v913 = vpack.c.b16 %v849, %v849
    %v914 = vpack.c.b16 %v850, %v850
    %v915 = vpack.c.b16 %v851, %v851
    %v916 = vpack.c.b16 %v852, %v852
    %v917 = vpack.c.b16 %v853, %v853
    %v918 = vpack.c.b16 %v854, %v854
    %v919 = vpack.c.b16 %v855, %v855
    %v920 = vpack.c.b16 %v856, %v856
    %v921 = vpack.c.b16 %v857, %v857
    %v922 = vpack.c.b16 %v858, %v858
    %v923 = vpack.c.b16 %v859, %v859
    %v924 = vpack.c.b16 %v860, %v860
    %v925 = vpack.c.b16 %v861, %v861
    %v926 = vpack.c.b16 %v862, %v862
    %v927 = vpack.c.b16 %v863, %v863
    %v928 = vpack.c.b16 %v864, %v864
    %993 = vst [vmem:[#allocation3] sm:$0xf] %v865
    %994 = vst [vmem:[#allocation3 + $0x4] sm:$0xf] %v866
    %995 = vst [vmem:[#allocation3 + $0x8] sm:$0xf] %v867
    %996 = vst [vmem:[#allocation3 + $0xc] sm:$0xf] %v868
    %997 = vst [vmem:[#allocation3 + $0x10] sm:$0xf] %v869
    %998 = vst [vmem:[#allocation3 + $0x14] sm:$0xf] %v870
    %999 = vst [vmem:[#allocation3 + $0x18] sm:$0xf] %v871
    %1000 = vst [vmem:[#allocation3 + $0x1c] sm:$0xf] %v872
    %1001 = vst [vmem:[#allocation3 + $0x20] sm:$0xf] %v873
    %1002 = vst [vmem:[#allocation3 + $0x24] sm:$0xf] %v874
    %1003 = vst [vmem:[#allocation3 + $0x28] sm:$0xf] %v875
    %1004 = vst [vmem:[#allocation3 + $0x2c] sm:$0xf] %v876
    %1005 = vst [vmem:[#allocation3 + $0x30] sm:$0xf] %v877
    %1006 = vst [vmem:[#allocation3 + $0x34] sm:$0xf] %v878
    %1007 = vst [vmem:[#allocation3 + $0x38] sm:$0xf] %v879
    %1008 = vst [vmem:[#allocation3 + $0x3c] sm:$0xf] %v880
    %1009 = vst [vmem:[#allocation3 + $0x40] sm:$0xf] %v881
    %1010 = vst [vmem:[#allocation3 + $0x44] sm:$0xf] %v882
    %1011 = vst [vmem:[#allocation3 + $0x48] sm:$0xf] %v883
    %1012 = vst [vmem:[#allocation3 + $0x4c] sm:$0xf] %v884
    %1013 = vst [vmem:[#allocation3 + $0x50] sm:$0xf] %v885
    %1014 = vst [vmem:[#allocation3 + $0x54] sm:$0xf] %v886
    %1015 = vst [vmem:[#allocation3 + $0x58] sm:$0xf] %v887
    %1016 = vst [vmem:[#allocation3 + $0x5c] sm:$0xf] %v888
    %1017 = vst [vmem:[#allocation3 + $0x60] sm:$0xf] %v889
    %1018 = vst [vmem:[#allocation3 + $0x64] sm:$0xf] %v890
    %1019 = vst [vmem:[#allocation3 + $0x68] sm:$0xf] %v891
    %1020 = vst [vmem:[#allocation3 + $0x6c] sm:$0xf] %v892
    %1021 = vst [vmem:[#allocation3 + $0x70] sm:$0xf] %v893
    %1022 = vst [vmem:[#allocation3 + $0x74] sm:$0xf] %v894
    %1023 = vst [vmem:[#allocation3 + $0x78] sm:$0xf] %v895
    %1024 = vst [vmem:[#allocation3 + $0x7c] sm:$0xf] %v896
    %1025 = vst [vmem:[#allocation3 + $0x80] sm:$0xf] %v897
    %1026 = vst [vmem:[#allocation3 + $0x84] sm:$0xf] %v898
    %1027 = vst [vmem:[#allocation3 + $0x88] sm:$0xf] %v899
    %1028 = vst [vmem:[#allocation3 + $0x8c] sm:$0xf] %v900
    %1029 = vst [vmem:[#allocation3 + $0x90] sm:$0xf] %v901
    %1030 = vst [vmem:[#allocation3 + $0x94] sm:$0xf] %v902
    %1031 = vst [vmem:[#allocation3 + $0x98] sm:$0xf] %v903
    %1032 = vst [vmem:[#allocation3 + $0x9c] sm:$0xf] %v904
    %1033 = vst [vmem:[#allocation3 + $0xa0] sm:$0xf] %v905
    %1034 = vst [vmem:[#allocation3 + $0xa4] sm:$0xf] %v906
    %1035 = vst [vmem:[#allocation3 + $0xa8] sm:$0xf] %v907
    %1036 = vst [vmem:[#allocation3 + $0xac] sm:$0xf] %v908
    %1037 = vst [vmem:[#allocation3 + $0xb0] sm:$0xf] %v909
    %1038 = vst [vmem:[#allocation3 + $0xb4] sm:$0xf] %v910
    %1039 = vst [vmem:[#allocation3 + $0xb8] sm:$0xf] %v911
    %1040 = vst [vmem:[#allocation3 + $0xbc] sm:$0xf] %v912
    %1041 = vst [vmem:[#allocation3 + $0xc0] sm:$0xf] %v913
    %1042 = vst [vmem:[#allocation3 + $0xc4] sm:$0xf] %v914
    %1043 = vst [vmem:[#allocation3 + $0xc8] sm:$0xf] %v915
    %1044 = vst [vmem:[#allocation3 + $0xcc] sm:$0xf] %v916
    %1045 = vst [vmem:[#allocation3 + $0xd0] sm:$0xf] %v917
    %1046 = vst [vmem:[#allocation3 + $0xd4] sm:$0xf] %v918
    %1047 = vst [vmem:[#allocation3 + $0xd8] sm:$0xf] %v919
    %1048 = vst [vmem:[#allocation3 + $0xdc] sm:$0xf] %v920
    %1049 = vst [vmem:[#allocation3 + $0xe0] sm:$0xf] %v921
    %1050 = vst [vmem:[#allocation3 + $0xe4] sm:$0xf] %v922
    %1051 = vst [vmem:[#allocation3 + $0xe8] sm:$0xf] %v923
    %1052 = vst [vmem:[#allocation3 + $0xec] sm:$0xf] %v924
    %1053 = vst [vmem:[#allocation3 + $0xf0] sm:$0xf] %v925
    %1054 = vst [vmem:[#allocation3 + $0xf4] sm:$0xf] %v926
    %1055 = vst [vmem:[#allocation3 + $0xf8] sm:$0xf] %v927
    %1056 = vst [vmem:[#allocation3 + $0xfc] sm:$0xf] %v928
    // Predicated region
    $region14: #{tpu_custom_call.1} parent=1 // pred_check
      _
    $region15: #{tpu_custom_call.1} parent=1 // pred_check_branch
      %1058 = sbr.rel (0) target = $region17
    $region16: #{tpu_custom_call.1} parent=1 // pred_region
      %s1060 = ssub.s32 4096, 4096
      %1061 = vsyncadd [#allocation4], %s1060
      %s1062 = sshll.u32 [#allocation3], 4
      %s1063 = int_to_ptr.vmem [resolvable:$true] %s1062
      %1068 = dma.vmem_to_hbm [thread:$0]  %s1063, 4096, %s3, [#allocation4], 64, 64, 4
    $region17: #{tpu_custom_call.1} parent=1 // pred_fallthru
      _
    // Predicated region
    $region18: #{tpu_custom_call.1} parent=1 // pred_check
      _
    $region19: #{tpu_custom_call.1} parent=1 // pred_check_branch
      %1070 = sbr.rel (0) target = $region21
    $region20: #{tpu_custom_call.1} parent=1 // pred_region
      %1071 = dma.done [#allocation4], 4096
    $region21: #{tpu_custom_call.1} parent=1 // pred_fallthru
      _
    %1072 = vsyncpa [#allocation4], 1

</llo_original>
